<compile_context>
chip_gen: v5e
topology: v5e:2x2
jax: 0.10.0
libtpu: 0.0.40
codegen_flags: <defaults>
</compile_context>

<pallas_src>
import functools

import numpy as np
import jax
import jax.numpy as jnp
from jax.experimental import pallas as pl
from jax.experimental.pallas import tpu as pltpu


def find_min_power(n):
    p = 1
    while p < n:
        p *= 2
    return p


def hadamard_matrix(n):
    """Sylvester-construction Hadamard matrix (matches scipy.linalg.hadamard)."""
    H = np.array([[1.0]], dtype=np.float32)
    while H.shape[0] < n:
        H = np.block([[H, H], [H, -H]])
    return H.astype(np.float32)


def _wht_conv2d_kernel(x_ref, kf_ref, kb_ref, w_ref, v_ref, t_ref, o_ref, *,
                       bblk, c_out, pods, residual):
    """One grid step = one block of `bblk` batch elements, all lane-dense 2-D.

    x_ref : (bblk*Cin, H*W)           input rows, ordered [batch][in_channel]
    kf_ref: (H*W, Hp*Wp)              forward WHT (pad folded in)
    kb_ref: (Hp*Wp, H*W)              inverse WHT (crop + 1/(Hp*Wp) folded in)
    w_ref : (pods*bblk*Cout, bblk*Cin) block-diag 1x1-conv weights [pod][batch][out_ch]
    v_ref : (pods*bblk*Cout, Hp*Wp)   spatial gates, pre-broadcast to row layout
    t_ref : (pods*bblk*Cout, Hp*Wp)   |thresholds|, pre-broadcast to row layout
    o_ref : (bblk*Cout, H*W)          output rows, ordered [batch][out_channel]
    """
    x = x_ref[...]                                                  # (bblk*Cin, HW)

    # Forward 2-D WHT (+ implicit zero-pad): one MXU call for the whole block.
    f2 = jnp.dot(x, kf_ref[...], preferred_element_type=jnp.float32)   # (bblk*Cin, HpWp)

    # All pods x all batch rows of the 1x1 conv in a single MXU call.
    f4 = jnp.dot(w_ref[...], f2, preferred_element_type=jnp.float32)   # (pods*bblk*Cout, HpWp)

    # Spatial gate (commutes with the channel mix) + soft-threshold (2 VPU ops).
    f4 = f4 * v_ref[...]
    thr = t_ref[...]
    f5 = f4 - jnp.clip(f4, -thr, thr)

    # Sum over pods (static, small pod count; contiguous row slices).
    rows = bblk * c_out
    acc = f5[0:rows, :]
    for p in range(1, pods):
        acc = acc + f5[p * rows:(p + 1) * rows, :]

    # Inverse 2-D WHT; crop and 1/(Hp*Wp) scale are folded into kb.
    y = jnp.dot(acc, kb_ref[...], preferred_element_type=jnp.float32)   # (bblk*Cout, HW)

    if residual:                       # Cout == Cin, same row layout as x
        y = y + x

    o_ref[...] = y                     # lane-dense, unmasked store


def _pick_bblk(batch, c_in, c_out, max_rows=256):
    """Largest divisor of `batch` whose row-blocks stay sublane(8)-aligned."""
    good = [d for d in range(1, batch + 1)
            if batch % d == 0
            and (d * c_in) % 8 == 0 and (d * c_out) % 8 == 0
            and d * max(c_in, c_out) <= max_rows]
    # Fall back to full-array blocks (always legal: block dims == array dims).
    return max(good) if good else batch


def wht_conv2d(x, v, w, t, residual=True, bblk=None):
    """x: (B, Cin, H, W); v, t: (pods, Hp, Wp); w: (pods, Cout, Cin)."""
    B, c_in, H, W = x.shape
    pods, c_out, c_in_w = w.shape
    if c_in_w != c_in:
        raise ValueError("w in_channels mismatch")
    if residual and c_out != c_in:
        raise ValueError("residual=True requires out_channels == in_channels")

    Hp, Wp = find_min_power(H), find_min_power(W)
    hw, hpwp = H * W, Hp * Wp

    # Host-precomputed transform matrices (pad / crop / inverse scale folded in).
    Hh = hadamard_matrix(Hp)
    Hw_ = hadamard_matrix(Wp)
    kf = jnp.asarray(np.kron(Hh[:H, :], Hw_[:W, :]))                    # (hw, hpwp)
    kb = jnp.asarray(np.kron(Hh[:, :H], Hw_[:, :W]) / float(hpwp))      # (hpwp, hw)

    if bblk is None:
        bblk = _pick_bblk(B, c_in, c_out)
    grid = (B // bblk,)

    # Block-diagonal (over the batch block) pod-stacked 1x1-conv weights:
    # rows ordered [pod][batch][out_channel], cols ordered [batch][in_channel].
    eye = jnp.eye(bblk, dtype=jnp.float32)
    wblk = jnp.concatenate(
        [jnp.kron(eye, w[p].astype(jnp.float32)) for p in range(pods)], axis=0)

    # Per-pod spatial gate / |threshold|, pre-broadcast to the merged row layout
    # (so the kernel does pure elementwise ops with no in-kernel broadcasts).
    v_rows = jnp.repeat(jnp.reshape(v.astype(jnp.float32), (pods, 1, hpwp)),
                        bblk * c_out, axis=1).reshape(pods * bblk * c_out, hpwp)
    t_rows = jnp.repeat(jnp.reshape(jnp.abs(t).astype(jnp.float32), (pods, 1, hpwp)),
                        bblk * c_out, axis=1).reshape(pods * bblk * c_out, hpwp)

    # Lane-dense 2-D input slab (free host reshape).
    x2 = jnp.reshape(x.astype(jnp.float32), (B * c_in, hw))

    kernel = functools.partial(_wht_conv2d_kernel, bblk=bblk, c_out=c_out,
                               pods=pods, residual=residual)

    out = pl.pallas_call(
        kernel,
        out_shape=jax.ShapeDtypeStruct((B * c_out, hw), jnp.float32),
        grid_spec=pltpu.PrefetchScalarGridSpec(
            num_scalar_prefetch=0,
            grid=grid,
            in_specs=[
                pl.BlockSpec((bblk * c_in, hw), lambda g: (g, 0)),
                pl.BlockSpec((hw, hpwp), lambda g: (0, 0)),
                pl.BlockSpec((hpwp, hw), lambda g: (0, 0)),
                pl.BlockSpec((pods * bblk * c_out, bblk * c_in), lambda g: (0, 0)),
                pl.BlockSpec((pods * bblk * c_out, hpwp), lambda g: (0, 0)),
                pl.BlockSpec((pods * bblk * c_out, hpwp), lambda g: (0, 0)),
            ],
            out_specs=pl.BlockSpec((bblk * c_out, hw), lambda g: (g, 0)),
        ),
        compiler_params=pltpu.CompilerParams(
            dimension_semantics=("parallel",),
            vmem_limit_bytes=48 * 1024 * 1024),
    )(x2, kf, kb, wblk, v_rows, t_rows)

    return jnp.reshape(out, (B, c_out, H, W))


def reference_forward(x, v, w, t, residual=True):
    """Pure-JAX mirror of the PyTorch forward (for correctness checking)."""
    B, C, H, W = x.shape
    Hp, Wp = find_min_power(H), find_min_power(W)
    Hh = jnp.asarray(hadamard_matrix(Hp))
    Hw = jnp.asarray(hadamard_matrix(Wp))
    f0 = jnp.pad(x, ((0, 0), (0, 0), (0, Hp - H), (0, Wp - W)))
    f1 = f0 @ Hw                                              # fwht axis=-1
    f2 = jnp.swapaxes(jnp.swapaxes(f1, -1, -2) @ Hh, -1, -2)  # fwht axis=-2
    pods = v.shape[0]
    acc = 0.0
    for p in range(pods):
        f3 = v[p] * f2
        f4 = jnp.einsum('oc,bchw->bohw', w[p], f3)
        thr = jnp.abs(t[p])
        f5 = jnp.sign(f4) * jnp.maximum(jnp.abs(f4) - thr, 0.0)
        acc = acc + f5
    f7 = acc @ Hw / Wp                                        # ifwht axis=-1
    f8 = jnp.swapaxes(jnp.swapaxes(f7, -1, -2) @ Hh, -1, -2) / Hp
    y = f8[..., :H, :W]
    if residual:
        y = y + x
    return y


if __name__ == "__main__":
    B, C, H, W = 2, 4, 16, 16
    pods = 2
    Hp, Wp = find_min_power(H), find_min_power(W)

    key = jax.random.PRNGKey(0)
    kx, kv, kw, kt = jax.random.split(key, 4)

    x = jax.random.normal(kx, (B, C, H, W), dtype=jnp.float32)
    # v ~ torch.rand((Hp, Wp)) per pod
    v = jax.random.uniform(kv, (pods, Hp, Wp), dtype=jnp.float32)
    # 1x1 conv weights (Cout, Cin), kaiming-uniform-style bound
    bound = 1.0 / np.sqrt(C)
    w = jax.random.uniform(kw, (pods, C, C), dtype=jnp.float32,
                           minval=-bound, maxval=bound)
    # soft-threshold parameters
    t = 0.1 * jax.random.uniform(kt, (pods, Hp, Wp), dtype=jnp.float32)

    y = wht_conv2d(x, v, w, t, residual=True)
    y = jax.block_until_ready(y)

    y_ref = reference_forward(x, v, w, t, residual=True)
    np.testing.assert_allclose(np.asarray(y), np.asarray(y_ref),
                               rtol=1e-4, atol=1e-4)
    print("KERNEL_OK")
</pallas_src>

<mosaic_0001>
module attributes {stable_mosaic.version = 11 : i64} {
  func.func @_wht_conv2d_kernel(%arg0: i32, %arg1: memref<8x256xf32, #tpu.memory_space<vmem>>, %arg2: memref<256x256xf32, #tpu.memory_space<vmem>>, %arg3: memref<256x256xf32, #tpu.memory_space<vmem>>, %arg4: memref<16x8xf32, #tpu.memory_space<vmem>>, %arg5: memref<16x256xf32, #tpu.memory_space<vmem>>, %arg6: memref<16x256xf32, #tpu.memory_space<vmem>>, %arg7: memref<8x256xf32, #tpu.memory_space<vmem>>) attributes {dimension_semantics = [#tpu.dimension_semantics<parallel>], iteration_bounds = array<i64: 1>, scalar_prefetch = 0 : i64, scratch_operands = 0 : i64, tpu.core_type = #tpu.core_type<tc>, window_params = [{transform_indices = @transform_0, window_bounds = array<i64: 8, 256>}, {pipeline_mode = #tpu.pipeline_mode<synchronous>, transform_indices = @transform_1, window_bounds = array<i64: 256, 256>}, {pipeline_mode = #tpu.pipeline_mode<synchronous>, transform_indices = @transform_2, window_bounds = array<i64: 256, 256>}, {pipeline_mode = #tpu.pipeline_mode<synchronous>, transform_indices = @transform_3, window_bounds = array<i64: 16, 8>}, {pipeline_mode = #tpu.pipeline_mode<synchronous>, transform_indices = @transform_4, window_bounds = array<i64: 16, 256>}, {pipeline_mode = #tpu.pipeline_mode<synchronous>, transform_indices = @transform_5, window_bounds = array<i64: 16, 256>}, {transform_indices = @transform_6, window_bounds = array<i64: 8, 256>}]} {
    %c0 = arith.constant 0 : index
    %c0_0 = arith.constant 0 : index
    %0 = vector.load %arg1[%c0, %c0_0] : memref<8x256xf32, #tpu.memory_space<vmem>>, vector<8x256xf32>
    %c0_1 = arith.constant 0 : index
    %c0_2 = arith.constant 0 : index
    %1 = vector.load %arg2[%c0_1, %c0_2] : memref<256x256xf32, #tpu.memory_space<vmem>>, vector<256x256xf32>
    %cst = arith.constant dense<0.000000e+00> : vector<8x256xf32>
    %2 = tpu.matmul %0, %1, %cst {dimension_numbers = #tpu.dot_dimension_numbers<[1], [0], [0], [1], [0, 0, 1, 1], [], []>} : vector<8x256xf32>, vector<256x256xf32>, vector<8x256xf32> -> vector<8x256xf32>
    %c0_3 = arith.constant 0 : index
    %c0_4 = arith.constant 0 : index
    %3 = vector.load %arg4[%c0_3, %c0_4] : memref<16x8xf32, #tpu.memory_space<vmem>>, vector<16x8xf32>
    %cst_5 = arith.constant dense<0.000000e+00> : vector<16x256xf32>
    %4 = tpu.matmul %3, %2, %cst_5 {dimension_numbers = #tpu.dot_dimension_numbers<[1], [0], [0], [1], [0, 0, 1, 1], [], []>} : vector<16x8xf32>, vector<8x256xf32>, vector<16x256xf32> -> vector<16x256xf32>
    %c0_6 = arith.constant 0 : index
    %c0_7 = arith.constant 0 : index
    %5 = vector.load %arg5[%c0_6, %c0_7] : memref<16x256xf32, #tpu.memory_space<vmem>>, vector<16x256xf32>
    %6 = arith.mulf %4, %5 : vector<16x256xf32>
    %c0_8 = arith.constant 0 : index
    %c0_9 = arith.constant 0 : index
    %7 = vector.load %arg6[%c0_8, %c0_9] : memref<16x256xf32, #tpu.memory_space<vmem>>, vector<16x256xf32>
    %cst_10 = arith.constant 0.000000e+00 : f32
    %8 = vector.broadcast %cst_10 : f32 to vector<16x256xf32>
    %9 = arith.subf %8, %7 : vector<16x256xf32>
    %10 = arith.maximumf %9, %6 : vector<16x256xf32>
    %11 = arith.minimumf %7, %10 : vector<16x256xf32>
    %12 = arith.subf %6, %11 : vector<16x256xf32>
    %13 = vector.extract_strided_slice %12 {offsets = [0, 0], sizes = [8, 256], strides = [1, 1]} : vector<16x256xf32> to vector<8x256xf32>
    %14 = vector.extract_strided_slice %12 {offsets = [8, 0], sizes = [8, 256], strides = [1, 1]} : vector<16x256xf32> to vector<8x256xf32>
    %15 = arith.addf %13, %14 : vector<8x256xf32>
    %c0_11 = arith.constant 0 : index
    %c0_12 = arith.constant 0 : index
    %16 = vector.load %arg3[%c0_11, %c0_12] : memref<256x256xf32, #tpu.memory_space<vmem>>, vector<256x256xf32>
    %cst_13 = arith.constant dense<0.000000e+00> : vector<8x256xf32>
    %17 = tpu.matmul %15, %16, %cst_13 {dimension_numbers = #tpu.dot_dimension_numbers<[1], [0], [0], [1], [0, 0, 1, 1], [], []>} : vector<8x256xf32>, vector<256x256xf32>, vector<8x256xf32> -> vector<8x256xf32>
    %18 = arith.addf %17, %0 : vector<8x256xf32>
    %c0_14 = arith.constant 0 : index
    %c0_15 = arith.constant 0 : index
    %19 = vector.load %arg7[%c0_14, %c0_15] : memref<8x256xf32, #tpu.memory_space<vmem>>, vector<8x256xf32>
    tpu.vector_store %arg7[%c0_14, %c0_15], %18 {strides = array<i32>} : memref<8x256xf32, #tpu.memory_space<vmem>>, vector<8x256xf32>,
    return
  }
  func.func @transform_0(%arg0: i32) -> (i32, i32) {
    %c0_i32 = arith.constant 0 : i32
    %c0_i32_0 = arith.constant 0 : i32
    return %arg0, %c0_i32 : i32, i32
  }
  func.func @transform_1(%arg0: i32) -> (i32, i32) {
    %c0_i32 = arith.constant 0 : i32
    %c0_i32_0 = arith.constant 0 : i32
    %c0_i32_1 = arith.constant 0 : i32
    return %c0_i32, %c0_i32_0 : i32, i32
  }
  func.func @transform_2(%arg0: i32) -> (i32, i32) {
    %c0_i32 = arith.constant 0 : i32
    %c0_i32_0 = arith.constant 0 : i32
    %c0_i32_1 = arith.constant 0 : i32
    return %c0_i32, %c0_i32_0 : i32, i32
  }
  func.func @transform_3(%arg0: i32) -> (i32, i32) {
    %c0_i32 = arith.constant 0 : i32
    %c0_i32_0 = arith.constant 0 : i32
    %c0_i32_1 = arith.constant 0 : i32
    return %c0_i32, %c0_i32_0 : i32, i32
  }
  func.func @transform_4(%arg0: i32) -> (i32, i32) {
    %c0_i32 = arith.constant 0 : i32
    %c0_i32_0 = arith.constant 0 : i32
    %c0_i32_1 = arith.constant 0 : i32
    return %c0_i32, %c0_i32_0 : i32, i32
  }
  func.func @transform_5(%arg0: i32) -> (i32, i32) {
    %c0_i32 = arith.constant 0 : i32
    %c0_i32_0 = arith.constant 0 : i32
    %c0_i32_1 = arith.constant 0 : i32
    return %c0_i32, %c0_i32_0 : i32, i32
  }
  func.func @transform_6(%arg0: i32) -> (i32, i32) {
    %c0_i32 = arith.constant 0 : i32
    %c0_i32_0 = arith.constant 0 : i32
    return %arg0, %c0_i32 : i32, i32
  }
}

</mosaic_0001>

<llo_original>
// kernel: tpu_custom_call.1
$region0: #{tpu_custom_call.1}
  #allocation0 [shape = 'u32[]', space=smem, size = 0x4, offset = 0x4, fixed_abs, tag = 'smem constant byte address 0x4 - core index']
  #allocation1 [shape = 'u32[72,128]{1,0:T(1,128)}', space=vmem, size = 0x9000, scoped, tag = 'internal scratch']
  %s0 = inlined_call_operand.vmem [shape: f32[8,256], index: 0, kind: input, shape index: {}]
  %s1 = inlined_call_operand.hbm [shape: f32[256,256], index: 1, kind: input, shape index: {}]
  %s2 = inlined_call_operand.hbm [shape: f32[256,256], index: 2, kind: input, shape index: {}]
  %s3 = inlined_call_operand.vmem [shape: f32[16,8], index: 3, kind: input, shape index: {}]
  %s4 = inlined_call_operand.hbm [shape: f32[16,256], index: 4, kind: input, shape index: {}]
  %s5 = inlined_call_operand.hbm [shape: f32[16,256], index: 5, kind: input, shape index: {}]
  %s6 = inlined_call_operand.hbm [shape: f32[8,256], index: 6, kind: output, shape index: {}]
  %s7 = sld [smem:[#allocation0]]
  $region50: #{tpu_custom_call.1} parent=0
    _
  %s9 = ssub.s32 1, %s7
  %s10 = scalar_select 0, %s9, %s7
  $region1: #{tpu_custom_call.1} parent=0
    #allocation2 [shape = 'u8[262144]{0}', space=vmem, size = 0x40000, scoped, tag = 'input window, operand 1, single buffered']
    #allocation3 [shape = 's32[1]{0}', space=sflag, size = 0x4, scoped, tag = 'scoped memory for tpu_custom_call.1']
    #allocation4 [shape = 's32[1]{0}', space=sflag, size = 0x4, scoped, tag = 'scoped memory for tpu_custom_call.1']
    #allocation5 [shape = 'u8[262144]{0}', space=vmem, size = 0x40000, scoped, tag = 'input window, operand 2, single buffered']
    #allocation6 [shape = 's32[1]{0}', space=sflag, size = 0x4, scoped, tag = 'scoped memory for tpu_custom_call.1']
    #allocation7 [shape = 'u8[16384]{0}', space=vmem, size = 0x4000, scoped, tag = 'input window, operand 4, single buffered']
    #allocation8 [shape = 'u8[16384]{0}', space=vmem, size = 0x4000, scoped, tag = 'input window, operand 5, single buffered']
    #allocation9 [shape = 's32[1]{0}', space=sflag, size = 0x4, scoped, tag = 'scoped memory for tpu_custom_call.1']
    #allocation10 [shape = 'u8[8192]{0}', space=vmem, size = 0x2000, scoped, tag = 'output window, operand 0, single buffered']
    %11 = vsyncpa [#allocation3], 0
    %12 = vsyncpa [#allocation6], 0
    %13 = vsyncpa [#allocation9], 0
    %14 = vsyncpa [#allocation4], 0
    // Predicated region
    $region2: #{tpu_custom_call.1} parent=1 // pred_check
      _
    $region3: #{tpu_custom_call.1} parent=1 // pred_check_branch
      %16 = sbr.rel (0) target = $region5
    $region4: #{tpu_custom_call.1} parent=1 // pred_region
      _
    $region5: #{tpu_custom_call.1} parent=1 // pred_fallthru
      _
    // Predicated region
    $region6: #{tpu_custom_call.1} parent=1 // pred_check
      _
    $region7: #{tpu_custom_call.1} parent=1 // pred_check_branch
      %18 = sbr.rel (0) target = $region9
    $region8: #{tpu_custom_call.1} parent=1 // pred_region
      %20 = vsyncadd [#allocation3], 0
      %s21 = sshll.u32 %s1, 4
      %s22 = int_to_ptr.hbm [resolvable:$true] %s21
      %s23 = sshll.u32 [#allocation2], 4
      %s24 = int_to_ptr.vmem [resolvable:$true] %s23
      %29 = dma.hbm_to_vmem [thread:$0]  %s22, 8192, %s24, [#allocation3], 256, 256, 16
    $region9: #{tpu_custom_call.1} parent=1 // pred_fallthru
      _
    // Predicated region
    $region10: #{tpu_custom_call.1} parent=1 // pred_check
      _
    $region11: #{tpu_custom_call.1} parent=1 // pred_check_branch
      %31 = sbr.rel (0) target = $region13
    $region12: #{tpu_custom_call.1} parent=1 // pred_region
      %33 = vsyncadd [#allocation6], 0
      %s34 = sshll.u32 %s2, 4
      %s35 = int_to_ptr.hbm [resolvable:$true] %s34
      %s36 = sshll.u32 [#allocation5], 4
      %s37 = int_to_ptr.vmem [resolvable:$true] %s36
      %42 = dma.hbm_to_vmem [thread:$0]  %s35, 8192, %s37, [#allocation6], 256, 256, 16
    $region13: #{tpu_custom_call.1} parent=1 // pred_fallthru
      _
    // Predicated region
    $region14: #{tpu_custom_call.1} parent=1 // pred_check
      _
    $region15: #{tpu_custom_call.1} parent=1 // pred_check_branch
      %44 = sbr.rel (0) target = $region17
    $region16: #{tpu_custom_call.1} parent=1 // pred_region
      _
    $region17: #{tpu_custom_call.1} parent=1 // pred_fallthru
      _
    // Predicated region
    $region18: #{tpu_custom_call.1} parent=1 // pred_check
      _
    $region19: #{tpu_custom_call.1} parent=1 // pred_check_branch
      %46 = sbr.rel (0) target = $region21
    $region20: #{tpu_custom_call.1} parent=1 // pred_region
      %48 = vsyncadd [#allocation6], 0
      %s49 = sshll.u32 %s4, 4
      %s50 = int_to_ptr.hbm [resolvable:$true] %s49
      %s51 = sshll.u32 [#allocation7], 4
      %s52 = int_to_ptr.vmem [resolvable:$true] %s51
      %57 = dma.hbm_to_vmem [thread:$0]  %s50, 512, %s52, [#allocation6], 256, 256, 16
    $region21: #{tpu_custom_call.1} parent=1 // pred_fallthru
      _
    // Predicated region
    $region22: #{tpu_custom_call.1} parent=1 // pred_check
      _
    $region23: #{tpu_custom_call.1} parent=1 // pred_check_branch
      %59 = sbr.rel (0) target = $region25
    $region24: #{tpu_custom_call.1} parent=1 // pred_region
      %61 = vsyncadd [#allocation9], 0
      %s62 = sshll.u32 %s5, 4
      %s63 = int_to_ptr.hbm [resolvable:$true] %s62
      %s64 = sshll.u32 [#allocation8], 4
      %s65 = int_to_ptr.vmem [resolvable:$true] %s64
      %70 = dma.hbm_to_vmem [thread:$0]  %s63, 512, %s65, [#allocation9], 256, 256, 16
    $region25: #{tpu_custom_call.1} parent=1 // pred_fallthru
      _
    // Predicated region
    $region26: #{tpu_custom_call.1} parent=1 // pred_check
      _
    $region27: #{tpu_custom_call.1} parent=1 // pred_check_branch
      %72 = sbr.rel (0) target = $region29
    $region28: #{tpu_custom_call.1} parent=1 // pred_region
      %74 = dma.done [#allocation3], 8192
    $region29: #{tpu_custom_call.1} parent=1 // pred_fallthru
      _
    // Predicated region
    $region30: #{tpu_custom_call.1} parent=1 // pred_check
      _
    $region31: #{tpu_custom_call.1} parent=1 // pred_check_branch
      %76 = sbr.rel (0) target = $region33
    $region32: #{tpu_custom_call.1} parent=1 // pred_region
      %78 = dma.done [#allocation6], 8192
    $region33: #{tpu_custom_call.1} parent=1 // pred_fallthru
      _
    // Predicated region
    $region34: #{tpu_custom_call.1} parent=1 // pred_check
      _
    $region35: #{tpu_custom_call.1} parent=1 // pred_check_branch
      %80 = sbr.rel (0) target = $region37
    $region36: #{tpu_custom_call.1} parent=1 // pred_region
      %82 = dma.done [#allocation6], 512
    $region37: #{tpu_custom_call.1} parent=1 // pred_fallthru
      _
    // Predicated region
    $region38: #{tpu_custom_call.1} parent=1 // pred_check
      _
    $region39: #{tpu_custom_call.1} parent=1 // pred_check_branch
      %84 = sbr.rel (0) target = $region41
    $region40: #{tpu_custom_call.1} parent=1 // pred_region
      %86 = dma.done [#allocation9], 512
    $region41: #{tpu_custom_call.1} parent=1 // pred_fallthru
      _
    %v87 = vld [vmem:[%s0] sm:$0xff]
    %v88 = vld [vmem:[%s0 + $0x8] sm:$0xff]
    %v89 = vld [vmem:[#allocation2] sm:$0xff]
    %v90 = vld [vmem:[#allocation2 + $0x8] sm:$0xff]
    %v91 = vld [vmem:[#allocation2 + $0x10] sm:$0xff]
    %v92 = vld [vmem:[#allocation2 + $0x18] sm:$0xff]
    %v93 = vld [vmem:[#allocation2 + $0x20] sm:$0xff]
    %v94 = vld [vmem:[#allocation2 + $0x28] sm:$0xff]
    %v95 = vld [vmem:[#allocation2 + $0x30] sm:$0xff]
    %v96 = vld [vmem:[#allocation2 + $0x38] sm:$0xff]
    %v97 = vld [vmem:[#allocation2 + $0x40] sm:$0xff]
    %v98 = vld [vmem:[#allocation2 + $0x48] sm:$0xff]
    %v99 = vld [vmem:[#allocation2 + $0x50] sm:$0xff]
    %v100 = vld [vmem:[#allocation2 + $0x58] sm:$0xff]
    %v101 = vld [vmem:[#allocation2 + $0x60] sm:$0xff]
    %v102 = vld [vmem:[#allocation2 + $0x68] sm:$0xff]
    %v103 = vld [vmem:[#allocation2 + $0x70] sm:$0xff]
    %v104 = vld [vmem:[#allocation2 + $0x78] sm:$0xff]
    %v105 = vld [vmem:[#allocation2 + $0x80] sm:$0xff]
    %v106 = vld [vmem:[#allocation2 + $0x88] sm:$0xff]
    %v107 = vld [vmem:[#allocation2 + $0x90] sm:$0xff]
    %v108 = vld [vmem:[#allocation2 + $0x98] sm:$0xff]
    %v109 = vld [vmem:[#allocation2 + $0xa0] sm:$0xff]
    %v110 = vld [vmem:[#allocation2 + $0xa8] sm:$0xff]
    %v111 = vld [vmem:[#allocation2 + $0xb0] sm:$0xff]
    %v112 = vld [vmem:[#allocation2 + $0xb8] sm:$0xff]
    %v113 = vld [vmem:[#allocation2 + $0xc0] sm:$0xff]
    %v114 = vld [vmem:[#allocation2 + $0xc8] sm:$0xff]
    %v115 = vld [vmem:[#allocation2 + $0xd0] sm:$0xff]
    %v116 = vld [vmem:[#allocation2 + $0xd8] sm:$0xff]
    %v117 = vld [vmem:[#allocation2 + $0xe0] sm:$0xff]
    %v118 = vld [vmem:[#allocation2 + $0xe8] sm:$0xff]
    %v119 = vld [vmem:[#allocation2 + $0xf0] sm:$0xff]
    %v120 = vld [vmem:[#allocation2 + $0xf8] sm:$0xff]
    %v121 = vld [vmem:[#allocation2 + $0x100] sm:$0xff]
    %v122 = vld [vmem:[#allocation2 + $0x108] sm:$0xff]
    %v123 = vld [vmem:[#allocation2 + $0x110] sm:$0xff]
    %v124 = vld [vmem:[#allocation2 + $0x118] sm:$0xff]
    %v125 = vld [vmem:[#allocation2 + $0x120] sm:$0xff]
    %v126 = vld [vmem:[#allocation2 + $0x128] sm:$0xff]
    %v127 = vld [vmem:[#allocation2 + $0x130] sm:$0xff]
    %v128 = vld [vmem:[#allocation2 + $0x138] sm:$0xff]
    %v129 = vld [vmem:[#allocation2 + $0x140] sm:$0xff]
    %v130 = vld [vmem:[#allocation2 + $0x148] sm:$0xff]
    %v131 = vld [vmem:[#allocation2 + $0x150] sm:$0xff]
    %v132 = vld [vmem:[#allocation2 + $0x158] sm:$0xff]
    %v133 = vld [vmem:[#allocation2 + $0x160] sm:$0xff]
    %v134 = vld [vmem:[#allocation2 + $0x168] sm:$0xff]
    %v135 = vld [vmem:[#allocation2 + $0x170] sm:$0xff]
    %v136 = vld [vmem:[#allocation2 + $0x178] sm:$0xff]
    %v137 = vld [vmem:[#allocation2 + $0x180] sm:$0xff]
    %v138 = vld [vmem:[#allocation2 + $0x188] sm:$0xff]
    %v139 = vld [vmem:[#allocation2 + $0x190] sm:$0xff]
    %v140 = vld [vmem:[#allocation2 + $0x198] sm:$0xff]
    %v141 = vld [vmem:[#allocation2 + $0x1a0] sm:$0xff]
    %v142 = vld [vmem:[#allocation2 + $0x1a8] sm:$0xff]
    %v143 = vld [vmem:[#allocation2 + $0x1b0] sm:$0xff]
    %v144 = vld [vmem:[#allocation2 + $0x1b8] sm:$0xff]
    %v145 = vld [vmem:[#allocation2 + $0x1c0] sm:$0xff]
    %v146 = vld [vmem:[#allocation2 + $0x1c8] sm:$0xff]
    %v147 = vld [vmem:[#allocation2 + $0x1d0] sm:$0xff]
    %v148 = vld [vmem:[#allocation2 + $0x1d8] sm:$0xff]
    %v149 = vld [vmem:[#allocation2 + $0x1e0] sm:$0xff]
    %v150 = vld [vmem:[#allocation2 + $0x1e8] sm:$0xff]
    %v151 = vld [vmem:[#allocation2 + $0x1f0] sm:$0xff]
    %v152 = vld [vmem:[#allocation2 + $0x1f8] sm:$0xff]
    %153 = vmatpush.msra.mxu0 %v119
    %154 = vmatpush.msra.mxu0 %v117
    %155 = vmatpush.msra.mxu0 %v115
    %156 = vmatpush.msra.mxu0 %v113
    %157 = vmatpush.msra.mxu0 %v111
    %158 = vmatpush.msra.mxu0 %v109
    %159 = vmatpush.msra.mxu0 %v107
    %160 = vmatpush.msra.mxu0 %v105
    %161 = vmatpush.msra.mxu0 %v103
    %162 = vmatpush.msra.mxu0 %v101
    %163 = vmatpush.msra.mxu0 %v99
    %164 = vmatpush.msra.mxu0 %v97
    %165 = vmatpush.msra.mxu0 %v95
    %166 = vmatpush.msra.mxu0 %v93
    %167 = vmatpush.msra.mxu0 %v91
    %168 = vmatpush.msra.mxu0 %v89
    %169 = vmatmul.f32.gmra.mxu0 %v87
    %v170 = vpop.f32.mrf.mxu0
    %v171 = vadd.f32 0.0, %v170
    %172 = vdwg.mxu0
    %173 = vmatpush.msra.mxu0 %v151
    %174 = vmatpush.msra.mxu0 %v149
    %175 = vmatpush.msra.mxu0 %v147
    %176 = vmatpush.msra.mxu0 %v145
    %177 = vmatpush.msra.mxu0 %v143
    %178 = vmatpush.msra.mxu0 %v141
    %179 = vmatpush.msra.mxu0 %v139
    %180 = vmatpush.msra.mxu0 %v137
    %181 = vmatpush.msra.mxu0 %v135
    %182 = vmatpush.msra.mxu0 %v133
    %183 = vmatpush.msra.mxu0 %v131
    %184 = vmatpush.msra.mxu0 %v129
    %185 = vmatpush.msra.mxu0 %v127
    %186 = vmatpush.msra.mxu0 %v125
    %187 = vmatpush.msra.mxu0 %v123
    %188 = vmatpush.msra.mxu0 %v121
    %189 = vmatmul.f32.gmra.mxu0 %v88
    %v190 = vpop.f32.mrf.mxu0
    %v191 = vadd.f32 %v171, %v190
    %192 = vdwg.mxu0
    %193 = vmatpush.msra.mxu0 %v120
    %194 = vmatpush.msra.mxu0 %v118
    %195 = vmatpush.msra.mxu0 %v116
    %196 = vmatpush.msra.mxu0 %v114
    %197 = vmatpush.msra.mxu0 %v112
    %198 = vmatpush.msra.mxu0 %v110
    %199 = vmatpush.msra.mxu0 %v108
    %200 = vmatpush.msra.mxu0 %v106
    %201 = vmatpush.msra.mxu0 %v104
    %202 = vmatpush.msra.mxu0 %v102
    %203 = vmatpush.msra.mxu0 %v100
    %204 = vmatpush.msra.mxu0 %v98
    %205 = vmatpush.msra.mxu0 %v96
    %206 = vmatpush.msra.mxu0 %v94
    %207 = vmatpush.msra.mxu0 %v92
    %208 = vmatpush.msra.mxu0 %v90
    %209 = vmatmul.f32.gmra.mxu0 %v87
    %v210 = vpop.f32.mrf.mxu0
    %v211 = vadd.f32 0.0, %v210
    %212 = vdwg.mxu0
    %213 = vmatpush.msra.mxu0 %v152
    %214 = vmatpush.msra.mxu0 %v150
    %215 = vmatpush.msra.mxu0 %v148
    %216 = vmatpush.msra.mxu0 %v146
    %217 = vmatpush.msra.mxu0 %v144
    %218 = vmatpush.msra.mxu0 %v142
    %219 = vmatpush.msra.mxu0 %v140
    %220 = vmatpush.msra.mxu0 %v138
    %221 = vmatpush.msra.mxu0 %v136
    %222 = vmatpush.msra.mxu0 %v134
    %223 = vmatpush.msra.mxu0 %v132
    %224 = vmatpush.msra.mxu0 %v130
    %225 = vmatpush.msra.mxu0 %v128
    %226 = vmatpush.msra.mxu0 %v126
    %227 = vmatpush.msra.mxu0 %v124
    %228 = vmatpush.msra.mxu0 %v122
    %229 = vmatmul.f32.gmra.mxu0 %v88
    %v230 = vpop.f32.mrf.mxu0
    %v231 = vadd.f32 %v211, %v230
    %232 = vdwg.mxu0
    %v233 = vld [vmem:[%s3] sm:$0xff]
    %v234 = vld [vmem:[%s3 + $0x8] sm:$0xff]
    %vm235 = vcmask 64512
    %v237 = vsel %vm235, %v233, 0
    %v240 = vsel %vm235, %v234, 0
    %242 = vmatpush.msra.mxu0 0.0
    %243 = vmatpush.msra.mxu0 0.0
    %244 = vmatpush.msra.mxu0 0.0
    %245 = vmatpush.msra.mxu0 0.0
    %246 = vmatpush.msra.mxu0 0.0
    %247 = vmatpush.msra.mxu0 0.0
    %248 = vmatpush.msra.mxu0 0.0
    %249 = vmatpush.msra.mxu0 0.0
    %250 = vmatpush.msra.mxu0 0.0
    %251 = vmatpush.msra.mxu0 0.0
    %252 = vmatpush.msra.mxu0 0.0
    %253 = vmatpush.msra.mxu0 0.0
    %254 = vmatpush.msra.mxu0 0.0
    %255 = vmatpush.msra.mxu0 0.0
    %256 = vmatpush.msra.mxu0 0.0
    %257 = vmatpush.msra.mxu0 %v191
    %258 = vmatmul.f32.gmra.mxu0 %v237
    %v259 = vpop.f32.mrf.mxu0
    %v260 = vadd.f32 0.0, %v259
    %261 = vmatmul.f32.gmra.mxu0 %v240
    %v262 = vpop.f32.mrf.mxu0
    %v263 = vadd.f32 0.0, %v262
    %264 = vdwg.mxu0
    %265 = vmatpush.msra.mxu0 0.0
    %266 = vmatpush.msra.mxu0 0.0
    %267 = vmatpush.msra.mxu0 0.0
    %268 = vmatpush.msra.mxu0 0.0
    %269 = vmatpush.msra.mxu0 0.0
    %270 = vmatpush.msra.mxu0 0.0
    %271 = vmatpush.msra.mxu0 0.0
    %272 = vmatpush.msra.mxu0 0.0
    %273 = vmatpush.msra.mxu0 0.0
    %274 = vmatpush.msra.mxu0 0.0
    %275 = vmatpush.msra.mxu0 0.0
    %276 = vmatpush.msra.mxu0 0.0
    %277 = vmatpush.msra.mxu0 0.0
    %278 = vmatpush.msra.mxu0 0.0
    %279 = vmatpush.msra.mxu0 0.0
    %280 = vmatpush.msra.mxu0 %v231
    %281 = vmatmul.f32.gmra.mxu0 %v237
    %v282 = vpop.f32.mrf.mxu0
    %v283 = vadd.f32 0.0, %v282
    %284 = vmatmul.f32.gmra.mxu0 %v240
    %v285 = vpop.f32.mrf.mxu0
    %v286 = vadd.f32 0.0, %v285
    %287 = vdwg.mxu0
    %v288 = vld [vmem:[#allocation7] sm:$0xff]
    %v289 = vld [vmem:[#allocation7 + $0x8] sm:$0xff]
    %v290 = vld [vmem:[#allocation7 + $0x10] sm:$0xff]
    %v291 = vld [vmem:[#allocation7 + $0x18] sm:$0xff]
    %v292 = vmul.f32 %v260, %v288
    %v293 = vmul.f32 %v283, %v289
    %v294 = vmul.f32 %v263, %v290
    %v295 = vmul.f32 %v286, %v291
    %v296 = vld [vmem:[#allocation8] sm:$0xff]
    %v297 = vld [vmem:[#allocation8 + $0x8] sm:$0xff]
    %v298 = vld [vmem:[#allocation8 + $0x10] sm:$0xff]
    %v299 = vld [vmem:[#allocation8 + $0x18] sm:$0xff]
    %v300 = vsub.f32 0.0, %v296
    %v301 = vsub.f32 0.0, %v297
    %v302 = vsub.f32 0.0, %v298
    %v303 = vsub.f32 0.0, %v299
    %v304 = vmax.f32 %v300, %v292
    %v305 = vmax.f32 %v301, %v293
    %v306 = vmax.f32 %v302, %v294
    %v307 = vmax.f32 %v303, %v295
    %v308 = vmin.f32 %v296, %v304
    %v309 = vmin.f32 %v297, %v305
    %v310 = vmin.f32 %v298, %v306
    %v311 = vmin.f32 %v299, %v307
    %v312 = vsub.f32 %v292, %v308
    %v313 = vsub.f32 %v293, %v309
    %v314 = vsub.f32 %v294, %v310
    %v315 = vsub.f32 %v295, %v311
    %v316 = vadd.f32 %v312, %v314
    %v317 = vadd.f32 %v313, %v315
    %v318 = vld [vmem:[#allocation5] sm:$0xff]
    %v319 = vld [vmem:[#allocation5 + $0x8] sm:$0xff]
    %v320 = vld [vmem:[#allocation5 + $0x10] sm:$0xff]
    %v321 = vld [vmem:[#allocation5 + $0x18] sm:$0xff]
    %v322 = vld [vmem:[#allocation5 + $0x20] sm:$0xff]
    %v323 = vld [vmem:[#allocation5 + $0x28] sm:$0xff]
    %v324 = vld [vmem:[#allocation5 + $0x30] sm:$0xff]
    %v325 = vld [vmem:[#allocation5 + $0x38] sm:$0xff]
    %v326 = vld [vmem:[#allocation5 + $0x40] sm:$0xff]
    %v327 = vld [vmem:[#allocation5 + $0x48] sm:$0xff]
    %v328 = vld [vmem:[#allocation5 + $0x50] sm:$0xff]
    %v329 = vld [vmem:[#allocation5 + $0x58] sm:$0xff]
    %v330 = vld [vmem:[#allocation5 + $0x60] sm:$0xff]
    %v331 = vld [vmem:[#allocation5 + $0x68] sm:$0xff]
    %v332 = vld [vmem:[#allocation5 + $0x70] sm:$0xff]
    %v333 = vld [vmem:[#allocation5 + $0x78] sm:$0xff]
    %v334 = vld [vmem:[#allocation5 + $0x80] sm:$0xff]
    %v335 = vld [vmem:[#allocation5 + $0x88] sm:$0xff]
    %v336 = vld [vmem:[#allocation5 + $0x90] sm:$0xff]
    %v337 = vld [vmem:[#allocation5 + $0x98] sm:$0xff]
    %v338 = vld [vmem:[#allocation5 + $0xa0] sm:$0xff]
    %v339 = vld [vmem:[#allocation5 + $0xa8] sm:$0xff]
    %v340 = vld [vmem:[#allocation5 + $0xb0] sm:$0xff]
    %v341 = vld [vmem:[#allocation5 + $0xb8] sm:$0xff]
    %v342 = vld [vmem:[#allocation5 + $0xc0] sm:$0xff]
    %v343 = vld [vmem:[#allocation5 + $0xc8] sm:$0xff]
    %v344 = vld [vmem:[#allocation5 + $0xd0] sm:$0xff]
    %v345 = vld [vmem:[#allocation5 + $0xd8] sm:$0xff]
    %v346 = vld [vmem:[#allocation5 + $0xe0] sm:$0xff]
    %v347 = vld [vmem:[#allocation5 + $0xe8] sm:$0xff]
    %v348 = vld [vmem:[#allocation5 + $0xf0] sm:$0xff]
    %v349 = vld [vmem:[#allocation5 + $0xf8] sm:$0xff]
    %v350 = vld [vmem:[#allocation5 + $0x100] sm:$0xff]
    %v351 = vld [vmem:[#allocation5 + $0x108] sm:$0xff]
    %v352 = vld [vmem:[#allocation5 + $0x110] sm:$0xff]
    %v353 = vld [vmem:[#allocation5 + $0x118] sm:$0xff]
    %v354 = vld [vmem:[#allocation5 + $0x120] sm:$0xff]
    %v355 = vld [vmem:[#allocation5 + $0x128] sm:$0xff]
    %v356 = vld [vmem:[#allocation5 + $0x130] sm:$0xff]
    %v357 = vld [vmem:[#allocation5 + $0x138] sm:$0xff]
    %v358 = vld [vmem:[#allocation5 + $0x140] sm:$0xff]
    %v359 = vld [vmem:[#allocation5 + $0x148] sm:$0xff]
    %v360 = vld [vmem:[#allocation5 + $0x150] sm:$0xff]
    %v361 = vld [vmem:[#allocation5 + $0x158] sm:$0xff]
    %v362 = vld [vmem:[#allocation5 + $0x160] sm:$0xff]
    %v363 = vld [vmem:[#allocation5 + $0x168] sm:$0xff]
    %v364 = vld [vmem:[#allocation5 + $0x170] sm:$0xff]
    %v365 = vld [vmem:[#allocation5 + $0x178] sm:$0xff]
    %v366 = vld [vmem:[#allocation5 + $0x180] sm:$0xff]
    %v367 = vld [vmem:[#allocation5 + $0x188] sm:$0xff]
    %v368 = vld [vmem:[#allocation5 + $0x190] sm:$0xff]
    %v369 = vld [vmem:[#allocation5 + $0x198] sm:$0xff]
    %v370 = vld [vmem:[#allocation5 + $0x1a0] sm:$0xff]
    %v371 = vld [vmem:[#allocation5 + $0x1a8] sm:$0xff]
    %v372 = vld [vmem:[#allocation5 + $0x1b0] sm:$0xff]
    %v373 = vld [vmem:[#allocation5 + $0x1b8] sm:$0xff]
    %v374 = vld [vmem:[#allocation5 + $0x1c0] sm:$0xff]
    %v375 = vld [vmem:[#allocation5 + $0x1c8] sm:$0xff]
    %v376 = vld [vmem:[#allocation5 + $0x1d0] sm:$0xff]
    %v377 = vld [vmem:[#allocation5 + $0x1d8] sm:$0xff]
    %v378 = vld [vmem:[#allocation5 + $0x1e0] sm:$0xff]
    %v379 = vld [vmem:[#allocation5 + $0x1e8] sm:$0xff]
    %v380 = vld [vmem:[#allocation5 + $0x1f0] sm:$0xff]
    %v381 = vld [vmem:[#allocation5 + $0x1f8] sm:$0xff]
    %382 = vmatpush.msra.mxu0 %v348
    %383 = vmatpush.msra.mxu0 %v346
    %384 = vmatpush.msra.mxu0 %v344
    %385 = vmatpush.msra.mxu0 %v342
    %386 = vmatpush.msra.mxu0 %v340
    %387 = vmatpush.msra.mxu0 %v338
    %388 = vmatpush.msra.mxu0 %v336
    %389 = vmatpush.msra.mxu0 %v334
    %390 = vmatpush.msra.mxu0 %v332
    %391 = vmatpush.msra.mxu0 %v330
    %392 = vmatpush.msra.mxu0 %v328
    %393 = vmatpush.msra.mxu0 %v326
    %394 = vmatpush.msra.mxu0 %v324
    %395 = vmatpush.msra.mxu0 %v322
    %396 = vmatpush.msra.mxu0 %v320
    %397 = vmatpush.msra.mxu0 %v318
    %398 = vmatmul.f32.gmra.mxu0 %v316
    %v399 = vpop.f32.mrf.mxu0
    %v400 = vadd.f32 %v87, %v399
    %401 = vdwg.mxu0
    %402 = vmatpush.msra.mxu0 %v380
    %403 = vmatpush.msra.mxu0 %v378
    %404 = vmatpush.msra.mxu0 %v376
    %405 = vmatpush.msra.mxu0 %v374
    %406 = vmatpush.msra.mxu0 %v372
    %407 = vmatpush.msra.mxu0 %v370
    %408 = vmatpush.msra.mxu0 %v368
    %409 = vmatpush.msra.mxu0 %v366
    %410 = vmatpush.msra.mxu0 %v364
    %411 = vmatpush.msra.mxu0 %v362
    %412 = vmatpush.msra.mxu0 %v360
    %413 = vmatpush.msra.mxu0 %v358
    %414 = vmatpush.msra.mxu0 %v356
    %415 = vmatpush.msra.mxu0 %v354
    %416 = vmatpush.msra.mxu0 %v352
    %417 = vmatpush.msra.mxu0 %v350
    %418 = vmatmul.f32.gmra.mxu0 %v317
    %v419 = vpop.f32.mrf.mxu0
    %v420 = vadd.f32 %v400, %v419
    %421 = vdwg.mxu0
    %422 = vmatpush.msra.mxu0 %v349
    %423 = vmatpush.msra.mxu0 %v347
    %424 = vmatpush.msra.mxu0 %v345
    %425 = vmatpush.msra.mxu0 %v343
    %426 = vmatpush.msra.mxu0 %v341
    %427 = vmatpush.msra.mxu0 %v339
    %428 = vmatpush.msra.mxu0 %v337
    %429 = vmatpush.msra.mxu0 %v335
    %430 = vmatpush.msra.mxu0 %v333
    %431 = vmatpush.msra.mxu0 %v331
    %432 = vmatpush.msra.mxu0 %v329
    %433 = vmatpush.msra.mxu0 %v327
    %434 = vmatpush.msra.mxu0 %v325
    %435 = vmatpush.msra.mxu0 %v323
    %436 = vmatpush.msra.mxu0 %v321
    %437 = vmatpush.msra.mxu0 %v319
    %438 = vmatmul.f32.gmra.mxu0 %v316
    %v439 = vpop.f32.mrf.mxu0
    %v440 = vadd.f32 %v88, %v439
    %441 = vdwg.mxu0
    %442 = vmatpush.msra.mxu0 %v381
    %443 = vmatpush.msra.mxu0 %v379
    %444 = vmatpush.msra.mxu0 %v377
    %445 = vmatpush.msra.mxu0 %v375
    %446 = vmatpush.msra.mxu0 %v373
    %447 = vmatpush.msra.mxu0 %v371
    %448 = vmatpush.msra.mxu0 %v369
    %449 = vmatpush.msra.mxu0 %v367
    %450 = vmatpush.msra.mxu0 %v365
    %451 = vmatpush.msra.mxu0 %v363
    %452 = vmatpush.msra.mxu0 %v361
    %453 = vmatpush.msra.mxu0 %v359
    %454 = vmatpush.msra.mxu0 %v357
    %455 = vmatpush.msra.mxu0 %v355
    %456 = vmatpush.msra.mxu0 %v353
    %457 = vmatpush.msra.mxu0 %v351
    %458 = vmatmul.f32.gmra.mxu0 %v317
    %v459 = vpop.f32.mrf.mxu0
    %v460 = vadd.f32 %v440, %v459
    %461 = vdwg.mxu0
    %462 = vst [vmem:[#allocation10] sm:$0xff] %v420
    %463 = vst [vmem:[#allocation10 + $0x8] sm:$0xff] %v460
    // Predicated region
    $region42: #{tpu_custom_call.1} parent=1 // pred_check
      _
    $region43: #{tpu_custom_call.1} parent=1 // pred_check_branch
      %465 = sbr.rel (0) target = $region45
    $region44: #{tpu_custom_call.1} parent=1 // pred_region
      %467 = vsyncadd [#allocation4], 0
      %s469 = sshll.u32 [#allocation10], 4
      %s470 = int_to_ptr.vmem [resolvable:$true] %s469
      %s471 = sshll.u32 %s6, 4
      %s472 = int_to_ptr.hbm [resolvable:$true] %s471
      %474 = dma.vmem_to_hbm [thread:$0]  %s470, 256, %s472, [#allocation4]
    $region45: #{tpu_custom_call.1} parent=1 // pred_fallthru
      _
    // Predicated region
    $region46: #{tpu_custom_call.1} parent=1 // pred_check
      _
    $region47: #{tpu_custom_call.1} parent=1 // pred_check_branch
      %476 = sbr.rel (0) target = $region49
    $region48: #{tpu_custom_call.1} parent=1 // pred_region
      %478 = dma.done [#allocation4], 256
    $region49: #{tpu_custom_call.1} parent=1 // pred_fallthru
      _
    %479 = vsyncpa [#allocation3], 1
    %480 = vsyncpa [#allocation6], 1
    %481 = vsyncpa [#allocation9], 1
    %482 = vsyncpa [#allocation4], 1

</llo_original>
